<compile_context>
chip_gen: v7x
topology: tpu7x:2x2x1
jax: 0.10.0
libtpu: 0.0.40
codegen_flags: <defaults>
</compile_context>

<pallas_src>
import math
import functools

import jax
import jax.numpy as jnp
from jax.experimental import pallas as pl
from jax.experimental.pallas import tpu as pltpu

# Full-f32 matmuls for the (non-Pallas) reference so the kernel-vs-reference check is meaningful.
jax.config.update("jax_default_matmul_precision", "highest")

_MM_DTYPE = jnp.bfloat16           # MXU operand dtype inside kernels (f32 accumulation)
_VMEM_LIMIT = 32 * 1024 * 1024     # explicit scoped-VMEM budget on every kernel


# ----------------------------------------------------------------------------
# helpers
# ----------------------------------------------------------------------------
def _pick_row_tile(n_rows: int, row_bytes: int, target_bytes: int = 2 << 20) -> int:
    """Biggest multiple-of-8 row tile near `target_bytes`.  Never falls back to a single
    whole-array block: callers use pl.cdiv grids, so a non-dividing tile just yields one
    ragged (masked) final block instead of blowing VMEM at production sizes."""
    cap = max(8, target_bytes // max(int(row_bytes), 1))
    if n_rows <= cap:
        return int(n_rows)
    t = (cap // 8) * 8
    fallback = max(8, t)
    while t >= 8:
        if n_rows % t == 0:
            return int(t)
        t -= 8
    return int(fallback)


def _mxu_dot(a, b, dims=None):
    """bf16-operand MXU matmul with f32 accumulation.  Explicit DEFAULT precision so the
    global 'highest' matmul setting never triggers a multi-pass algorithm inside kernels."""
    a = a.astype(_MM_DTYPE)
    b = b.astype(_MM_DTYPE)
    if dims is None:
        return jnp.dot(a, b, preferred_element_type=jnp.float32,
                       precision=jax.lax.Precision.DEFAULT)
    return jax.lax.dot_general(a, b, dims, preferred_element_type=jnp.float32,
                               precision=jax.lax.Precision.DEFAULT)


def make_pe_table(max_len: int, dim: int) -> jnp.ndarray:
    """Replicates the buffer built in PositionalEncoding.__init__ (shape (max_len, dim))."""
    position = jnp.arange(0, max_len, dtype=jnp.float32)[:, None]
    div_term = jnp.exp(
        jnp.arange(0, dim, 2, dtype=jnp.float32) * -(math.log(10000.0) / dim))
    arg = position * div_term
    pe = jnp.zeros((max_len, dim), dtype=jnp.float32)
    pe = pe.at[:, 0::2].set(jnp.sin(arg))
    pe = pe.at[:, 1::2].set(jnp.cos(arg))
    return pe


# ----------------------------------------------------------------------------
# PositionalEncoding kernel (scale + PE add, optional on-chip inverted dropout)
# ----------------------------------------------------------------------------
def _pos_enc_kernel(seed_ref, emb_ref, pe_ref, out_ref, *, scale, dropout_p, training):
    # emb_ref: (B, tile_s, D); pe_ref: (tile_s, D) or (1, D)
    x = emb_ref[...].astype(jnp.float32) * scale
    x = x + pe_ref[...][None, :, :]                      # broadcast over leading batch axis
    if training and dropout_p > 0.0:
        # Per-tile seed; integer-threshold dropout (no float converts).  Only traced when
        # training=True, so eval mode never touches the PRNG.
        pltpu.prng_seed(seed_ref[0] + pl.program_id(0))
        bits = pltpu.bitcast(pltpu.prng_random_bits(x.shape), jnp.uint32)
        thresh = jnp.uint32(min(int(dropout_p * 4294967296.0), 4294967295))
        keep = bits >= thresh
        x = jnp.where(keep, x * (1.0 / (1.0 - dropout_p)), jnp.float32(0.0))
    out_ref[...] = x.astype(out_ref.dtype)


def positional_encoding_bsd(emb_bsd, pe_table, *, dropout_p=0.0, training=False,
                            step=None, seed=0):
    """Positional encoding on a (B, S, D) tensor (batch leading)."""
    B, S, D = emb_bsd.shape
    scale = math.sqrt(D)
    itemsize = jnp.dtype(emb_bsd.dtype).itemsize
    tile_s = _pick_row_tile(S, B * D * itemsize, target_bytes=4 << 20)
    grid = (pl.cdiv(S, tile_s),)

    if step is None:
        pe_slice = pe_table[:S].astype(jnp.float32)                      # (S, D)
        pe_spec = pl.BlockSpec((tile_s, D), lambda i, seed_ref: (i, 0))
    else:
        pe_slice = pe_table[step][None, :].astype(jnp.float32)           # (1, D)
        pe_spec = pl.BlockSpec((1, D), lambda i, seed_ref: (0, 0))

    seed_arr = jnp.asarray([seed], dtype=jnp.int32)
    kernel = functools.partial(_pos_enc_kernel, scale=scale,
                               dropout_p=float(dropout_p), training=bool(training))
    return pl.pallas_call(
        kernel,
        out_shape=jax.ShapeDtypeStruct((B, S, D), emb_bsd.dtype),
        grid_spec=pltpu.PrefetchScalarGridSpec(
            num_scalar_prefetch=1,
            grid=grid,
            in_specs=[
                pl.BlockSpec((B, tile_s, D), lambda i, seed_ref: (0, i, 0)),
                pe_spec,
            ],
            out_specs=pl.BlockSpec((B, tile_s, D), lambda i, seed_ref: (0, i, 0)),
        ),
        compiler_params=pltpu.CompilerParams(
            dimension_semantics=("parallel",), vmem_limit_bytes=_VMEM_LIMIT),
    )(seed_arr, emb_bsd, pe_slice)


def positional_encoding(emb, pe_table, **kwargs):
    """Module-native layout: emb is (S, B, D) like the PyTorch PositionalEncoding."""
    out_bsd = positional_encoding_bsd(jnp.transpose(emb, (1, 0, 2)), pe_table, **kwargs)
    return jnp.transpose(out_bsd, (1, 0, 2))


# ----------------------------------------------------------------------------
# LayerNorm kernel (used standalone only for the final decoder LayerNorm)
# ----------------------------------------------------------------------------
def _layer_norm_kernel(x_ref, g_ref, b_ref, o_ref, *, eps):
    x = x_ref[...].astype(jnp.float32)
    mean = jnp.mean(x, axis=-1, keepdims=True)
    xc = x - mean
    var = jnp.mean(xc * xc, axis=-1, keepdims=True)
    o_ref[...] = (xc * jax.lax.rsqrt(var + eps) * g_ref[...] + b_ref[...]).astype(o_ref.dtype)


def layer_norm(x, g, b, *, eps=1e-6):
    orig_shape = x.shape
    D = orig_shape[-1]
    x2 = x.reshape(-1, D)
    R = x2.shape[0]
    tile_r = _pick_row_tile(R, D * 4, target_bytes=4 << 20)
    out = pl.pallas_call(
        functools.partial(_layer_norm_kernel, eps=eps),
        out_shape=jax.ShapeDtypeStruct((R, D), x.dtype),
        grid=(pl.cdiv(R, tile_r),),
        in_specs=[
            pl.BlockSpec((tile_r, D), lambda i: (i, 0)),
            pl.BlockSpec((1, D), lambda i: (0, 0)),
            pl.BlockSpec((1, D), lambda i: (0, 0)),
        ],
        out_specs=pl.BlockSpec((tile_r, D), lambda i: (i, 0)),
        compiler_params=pltpu.CompilerParams(
            dimension_semantics=("parallel",), vmem_limit_bytes=_VMEM_LIMIT),
    )(x2, g.reshape(1, D), b.reshape(1, D))
    return out.reshape(orig_shape)


# ----------------------------------------------------------------------------
# Fused LN + Linear / Linear / Linear(+residual) kernels (row tiled, MXU bf16)
# ----------------------------------------------------------------------------
def _ln_linear_kernel(x_ref, g_ref, be_ref, w_ref, b_ref, o_ref, *, eps):
    x = x_ref[...].astype(jnp.float32)
    mean = jnp.mean(x, axis=-1, keepdims=True)
    xc = x - mean
    var = jnp.mean(xc * xc, axis=-1, keepdims=True)
    xn = xc * jax.lax.rsqrt(var + eps) * g_ref[...] + be_ref[...]
    o_ref[...] = (_mxu_dot(xn, w_ref[...]) + b_ref[...]).astype(o_ref.dtype)


def _linear_kernel(x_ref, w_ref, b_ref, o_ref):
    o_ref[...] = (_mxu_dot(x_ref[...], w_ref[...]) + b_ref[...]).astype(o_ref.dtype)


def _linear_residual_kernel(x_ref, w_ref, b_ref, r_ref, o_ref):
    y = _mxu_dot(x_ref[...], w_ref[...]) + b_ref[...] + r_ref[...].astype(jnp.float32)
    o_ref[...] = y.astype(o_ref.dtype)


def ln_linear(x2d, g, b, w, bias, *, eps=1e-6):
    """Fused LayerNorm(eps=1e-6) -> x @ W + bias (packed QKV / Q projections)."""
    R, Din = x2d.shape
    Dout = w.shape[1]
    tile_r = _pick_row_tile(R, (Din + Dout) * 4)
    # TODO(synk): on v7x, the constant weight blocks could use pipeline_mode=pl.Buffered(1)
    # to halve their VMEM footprint; default buffering kept for portability.
    return pl.pallas_call(
        functools.partial(_ln_linear_kernel, eps=eps),
        out_shape=jax.ShapeDtypeStruct((R, Dout), x2d.dtype),
        grid=(pl.cdiv(R, tile_r),),
        in_specs=[
            pl.BlockSpec((tile_r, Din), lambda i: (i, 0)),
            pl.BlockSpec((1, Din), lambda i: (0, 0)),
            pl.BlockSpec((1, Din), lambda i: (0, 0)),
            pl.BlockSpec((Din, Dout), lambda i: (0, 0)),
            pl.BlockSpec((1, Dout), lambda i: (0, 0)),
        ],
        out_specs=pl.BlockSpec((tile_r, Dout), lambda i: (i, 0)),
        compiler_params=pltpu.CompilerParams(
            dimension_semantics=("parallel",), vmem_limit_bytes=_VMEM_LIMIT),
    )(x2d, g.reshape(1, Din), b.reshape(1, Din), w, bias.reshape(1, Dout))


def linear(x2d, w, bias):
    R, Din = x2d.shape
    Dout = w.shape[1]
    tile_r = _pick_row_tile(R, (Din + Dout) * 4)
    return pl.pallas_call(
        _linear_kernel,
        out_shape=jax.ShapeDtypeStruct((R, Dout), x2d.dtype),
        grid=(pl.cdiv(R, tile_r),),
        in_specs=[
            pl.BlockSpec((tile_r, Din), lambda i: (i, 0)),
            pl.BlockSpec((Din, Dout), lambda i: (0, 0)),
            pl.BlockSpec((1, Dout), lambda i: (0, 0)),
        ],
        out_specs=pl.BlockSpec((tile_r, Dout), lambda i: (i, 0)),
        compiler_params=pltpu.CompilerParams(
            dimension_semantics=("parallel",), vmem_limit_bytes=_VMEM_LIMIT),
    )(x2d, w, bias.reshape(1, Dout))


def linear_residual(x2d, w, bias, res2d):
    """x @ W + bias + residual (fused residual add: removes an HBM round-trip)."""
    R, Din = x2d.shape
    Dout = w.shape[1]
    tile_r = _pick_row_tile(R, (Din + 2 * Dout) * 4)
    return pl.pallas_call(
        _linear_residual_kernel,
        out_shape=jax.ShapeDtypeStruct((R, Dout), x2d.dtype),
        grid=(pl.cdiv(R, tile_r),),
        in_specs=[
            pl.BlockSpec((tile_r, Din), lambda i: (i, 0)),
            pl.BlockSpec((Din, Dout), lambda i: (0, 0)),
            pl.BlockSpec((1, Dout), lambda i: (0, 0)),
            pl.BlockSpec((tile_r, Dout), lambda i: (i, 0)),
        ],
        out_specs=pl.BlockSpec((tile_r, Dout), lambda i: (i, 0)),
        compiler_params=pltpu.CompilerParams(
            dimension_semantics=("parallel",), vmem_limit_bytes=_VMEM_LIMIT),
    )(x2d, w, bias.reshape(1, Dout), res2d)


# ----------------------------------------------------------------------------
# Attention core kernels (packed-head layout, no (B,H,L,dh) transposes)
# ----------------------------------------------------------------------------
def _self_attn_kernel(qkv_ref, pad_ref, ctx_ref, *, heads, dh, scale):
    # qkv_ref: (L, 3D) packed [Q|K|V]; pad_ref: (1, L) key padding; ctx_ref: (L, D).
    L = qkv_ref.shape[0]
    D = heads * dh
    rows = jax.lax.broadcasted_iota(jnp.int32, (L, L), 0)
    cols = jax.lax.broadcasted_iota(jnp.int32, (L, L), 1)
    masked = jnp.logical_or(cols > rows, pad_ref[...] > 0.0)   # causal | key padding
    neg = jnp.float32(-1e18)
    # TODO(synk): for long sequences add an Lk grid axis with online-softmax (flash) scratch.
    for h in range(heads):                                     # static unroll over heads
        q = qkv_ref[:, h * dh:(h + 1) * dh]
        k = qkv_ref[:, D + h * dh:D + (h + 1) * dh]
        v = qkv_ref[:, 2 * D + h * dh:2 * D + (h + 1) * dh]
        s = _mxu_dot(q, k, (((1,), (1,)), ((), ()))) * scale   # (L, L)
        s = jnp.where(masked, neg, s)
        s = s - jnp.max(s, axis=-1, keepdims=True)
        p = jnp.exp(s)
        p = p * pl.reciprocal(jnp.sum(p, axis=-1, keepdims=True), approx=True)
        # TODO(synk): attention-prob dropout omitted (eval-mode nn.Dropout identity).
        ctx_ref[:, h * dh:(h + 1) * dh] = _mxu_dot(p, v).astype(ctx_ref.dtype)


def _cross_attn_kernel(q_ref, kv_ref, pad_ref, ctx_ref, attn_ref, *, heads, dh, scale):
    # q_ref: (tq, D); kv_ref: (Lk, 2D) packed [K|V]; pad_ref: (1, Lk);
    # ctx_ref: (tq, D); attn_ref: (tq, Lk) -- head-0 probs only (all the module keeps).
    D = heads * dh
    masked = pad_ref[...] > 0.0
    neg = jnp.float32(-1e18)
    for h in range(heads):
        q = q_ref[:, h * dh:(h + 1) * dh]
        k = kv_ref[:, h * dh:(h + 1) * dh]
        v = kv_ref[:, D + h * dh:D + (h + 1) * dh]
        s = _mxu_dot(q, k, (((1,), (1,)), ((), ()))) * scale   # (tq, Lk)
        s = jnp.where(masked, neg, s)
        s = s - jnp.max(s, axis=-1, keepdims=True)
        p = jnp.exp(s)
        p = p * pl.reciprocal(jnp.sum(p, axis=-1, keepdims=True), approx=True)
        if h == 0:
            attn_ref[...] = p.astype(attn_ref.dtype)
        ctx_ref[:, h * dh:(h + 1) * dh] = _mxu_dot(p, v).astype(ctx_ref.dtype)


def self_attention_core(qkv, tgt_pad, *, heads):
    """Causal masked self-attention.  qkv: (B, L, 3D); tgt_pad: (B, 1, L) float.
    Returns ctx (B, L, D); no attention-probability output (module discards it)."""
    B, L, threeD = qkv.shape
    D = threeD // 3
    dh = D // heads
    kernel = functools.partial(_self_attn_kernel, heads=heads, dh=dh,
                               scale=1.0 / math.sqrt(dh))
    return pl.pallas_call(
        kernel,
        out_shape=jax.ShapeDtypeStruct((B, L, D), jnp.float32),
        grid=(B,),
        in_specs=[
            pl.BlockSpec((None, L, threeD), lambda b: (b, 0, 0)),
            pl.BlockSpec((None, 1, L), lambda b: (b, 0, 0)),
        ],
        out_specs=pl.BlockSpec((None, L, D), lambda b: (b, 0, 0)),
        compiler_params=pltpu.CompilerParams(
            dimension_semantics=("parallel",), vmem_limit_bytes=_VMEM_LIMIT),
    )(qkv, tgt_pad)


def cross_attention_core(q, kv, src_pad, *, heads):
    """Cross-attention.  q: (B, Lq, D); kv: (B, Lk, 2D); src_pad: (B, 1, Lk) float.
    Returns ctx (B, Lq, D) and the head-0 attention probabilities (B, Lq, Lk)."""
    B, Lq, D = q.shape
    Lk = kv.shape[1]
    dh = D // heads
    tq = _pick_row_tile(Lq, (2 * D + Lk) * 4)
    kernel = functools.partial(_cross_attn_kernel, heads=heads, dh=dh,
                               scale=1.0 / math.sqrt(dh))
    ctx, attn = pl.pallas_call(
        kernel,
        out_shape=(jax.ShapeDtypeStruct((B, Lq, D), jnp.float32),
                   jax.ShapeDtypeStruct((B, Lq, Lk), jnp.float32)),
        grid=(B, pl.cdiv(Lq, tq)),
        in_specs=[
            pl.BlockSpec((None, tq, D), lambda b, qi: (b, qi, 0)),
            pl.BlockSpec((None, Lk, 2 * D), lambda b, qi: (b, 0, 0)),
            pl.BlockSpec((None, 1, Lk), lambda b, qi: (b, 0, 0)),
        ],
        out_specs=(pl.BlockSpec((None, tq, D), lambda b, qi: (b, qi, 0)),
                   pl.BlockSpec((None, tq, Lk), lambda b, qi: (b, qi, 0))),
        compiler_params=pltpu.CompilerParams(
            dimension_semantics=("parallel", "parallel"),
            vmem_limit_bytes=_VMEM_LIMIT),
    )(q, kv, src_pad)
    return ctx, attn


# ----------------------------------------------------------------------------
# Fused PositionwiseFeedForward kernel: LN -> W1 -> ReLU -> W2 -> +residual
# ----------------------------------------------------------------------------
def _ffn_kernel(x_ref, g_ref, be_ref, w1_ref, b1_ref, w2_ref, b2_ref, o_ref, *, eps):
    x = x_ref[...].astype(jnp.float32)
    mean = jnp.mean(x, axis=-1, keepdims=True)
    xc = x - mean
    var = jnp.mean(xc * xc, axis=-1, keepdims=True)
    xn = xc * jax.lax.rsqrt(var + eps) * g_ref[...] + be_ref[...]
    h = jnp.maximum(_mxu_dot(xn, w1_ref[...]) + b1_ref[...], 0.0)
    y = _mxu_dot(h, w2_ref[...]) + b2_ref[...]
    # TODO(synk): FFN dropouts omitted (eval-mode nn.Dropout identity).
    o_ref[...] = (y + x).astype(o_ref.dtype)


def positionwise_ffn(x, p, *, eps=1e-6):
    B, L, D = x.shape
    F_dim = p['w1'].shape[1]
    x2 = x.reshape(B * L, D)
    R = x2.shape[0]
    tile_r = _pick_row_tile(R, (2 * D + F_dim) * 4)
    # TODO(synk): for very large d_ff on v7x, add an inner 'arbitrary' grid axis over F with an
    # f32 accumulator instead of keeping W1/W2 fully resident.
    out = pl.pallas_call(
        functools.partial(_ffn_kernel, eps=eps),
        out_shape=jax.ShapeDtypeStruct((R, D), x.dtype),
        grid=(pl.cdiv(R, tile_r),),
        in_specs=[
            pl.BlockSpec((tile_r, D), lambda i: (i, 0)),
            pl.BlockSpec((1, D), lambda i: (0, 0)),
            pl.BlockSpec((1, D), lambda i: (0, 0)),
            pl.BlockSpec((D, F_dim), lambda i: (0, 0)),
            pl.BlockSpec((1, F_dim), lambda i: (0, 0)),
            pl.BlockSpec((F_dim, D), lambda i: (0, 0)),
            pl.BlockSpec((1, D), lambda i: (0, 0)),
        ],
        out_specs=pl.BlockSpec((tile_r, D), lambda i: (i, 0)),
        compiler_params=pltpu.CompilerParams(
            dimension_semantics=("parallel",), vmem_limit_bytes=_VMEM_LIMIT),
    )(x2, p['ln_w'].reshape(1, D), p['ln_b'].reshape(1, D),
      p['w1'], p['b1'].reshape(1, F_dim), p['w2'], p['b2'].reshape(1, D))
    return out.reshape(B, L, D)


# ----------------------------------------------------------------------------
# Multi-head attention blocks / decoder layer / decoder (kernel composition)
# ----------------------------------------------------------------------------
def multihead_self_attention(x, tgt_pad, ln_w, ln_b, p, *, heads):
    """LN1 -> packed QKV projection -> causal attention -> out-proj (+residual x)."""
    B, Lt, D = x.shape
    x2 = x.reshape(B * Lt, D)
    qkv = ln_linear(x2, ln_w, ln_b, p['w_qkv'], p['b_qkv']).reshape(B, Lt, 3 * D)
    ctx = self_attention_core(qkv, tgt_pad, heads=heads)
    out = linear_residual(ctx.reshape(B * Lt, D), p['wo'], p['bo'], x2)
    return out.reshape(B, Lt, D)


def multihead_cross_attention(query, memory, src_pad, ln_w, ln_b, p, *, heads):
    """LN2(query) -> Q proj; memory -> packed KV proj; attention -> out-proj (+residual query)."""
    B, Lt, D = query.shape
    Ls = memory.shape[1]
    q2 = query.reshape(B * Lt, D)
    q = ln_linear(q2, ln_w, ln_b, p['wq'], p['bq']).reshape(B, Lt, D)
    kv = linear(memory.reshape(B * Ls, D), p['w_kv'], p['b_kv']).reshape(B, Ls, 2 * D)
    ctx, attn = cross_attention_core(q, kv, src_pad, heads=heads)
    out = linear_residual(ctx.reshape(B * Lt, D), p['wo'], p['bo'], q2)
    return out.reshape(B, Lt, D), attn


def transformer_decoder_layer(x, memory, src_pad, tgt_pad, p, *, heads):
    # self-attention block: query = self_attn(LN1(x)) + x     (drop() identity in eval mode)
    query = multihead_self_attention(x, tgt_pad, p['ln1_w'], p['ln1_b'],
                                     p['self_attn'], heads=heads)
    # cross-attention block: ffn_in = ctx_attn(memory, memory, LN2(query)) + query
    ffn_in, attn = multihead_cross_attention(query, memory, src_pad,
                                             p['ln2_w'], p['ln2_b'],
                                             p['ctx_attn'], heads=heads)
    # feed-forward block (fused LN -> W1 -> ReLU -> W2 -> +residual)
    out = positionwise_ffn(ffn_in, p['ffn'])
    return out, attn


def transformer_decoder_forward(params, src, tgt, memory_bank, *, heads, padding_idx=0):
    """src: (Ls, B) int, tgt: (Lt, B) int, memory_bank: (Ls, B, D).  Eval mode, step=None."""
    Lt, B = tgt.shape
    D = params['embedding'].shape[1]
    # TODO(synk): embedding lookup (gather) stays in plain JAX; no dense Pallas tiling pattern.
    emb = params['embedding'][tgt]                                          # (Lt, B, D)
    x = positional_encoding_bsd(jnp.transpose(emb, (1, 0, 2)), params['pe'])  # (B, Lt, D)
    memory = jnp.transpose(memory_bank, (1, 0, 2))                          # (B, Ls, D)
    # Only the (B,1,L) padding rows are materialized; causal mask is built in-kernel via iota.
    src_pad = (src.T == padding_idx).astype(jnp.float32)[:, None, :]        # (B, 1, Ls)
    tgt_pad = (tgt.T == padding_idx).astype(jnp.float32)[:, None, :]        # (B, 1, Lt)

    attn = None
    for lp in params['layers']:
        x, attn = transformer_decoder_layer(x, memory, src_pad, tgt_pad, lp, heads=heads)
    x = layer_norm(x, params['ln_w'], params['ln_b'])
    dec_outs = jnp.transpose(x, (1, 0, 2))                                  # (Lt, B, D)
    attn = jnp.transpose(attn, (1, 0, 2))                                   # (Lt, B, Ls)
    return dec_outs, attn


# ----------------------------------------------------------------------------
# Pure-JAX reference (mirrors the PyTorch module in eval mode, full f32)
# ----------------------------------------------------------------------------
def _ref_ln(x, g, b, eps=1e-6):
    m = jnp.mean(x, -1, keepdims=True)
    v = jnp.mean((x - m) ** 2, -1, keepdims=True)
    return (x - m) * jax.lax.rsqrt(v + eps) * g + b


def _ref_mha(key_in, value_in, query_in, mask_f, p, heads):
    B, Lk, D = key_in.shape
    Lq = query_in.shape[1]
    dh = D // heads

    def proj(x, w, b):
        return (x @ w + b).reshape(B, -1, heads, dh).transpose(0, 2, 1, 3)

    k = proj(key_in, p['wk'], p['bk'])
    v = proj(value_in, p['wv'], p['bv'])
    q = proj(query_in, p['wq'], p['bq']) / math.sqrt(dh)
    scores = jnp.einsum('bhqd,bhkd->bhqk', q, k)
    scores = jnp.where(mask_f[:, None, :, :] > 0, jnp.float32(-1e18), scores)
    attn = jax.nn.softmax(scores, axis=-1)
    ctx = jnp.einsum('bhqk,bhkd->bhqd', attn, v).transpose(0, 2, 1, 3).reshape(B, Lq, D)
    return ctx @ p['wo'] + p['bo'], attn[:, 0]


def _ref_ffn(x, p):
    xn = _ref_ln(x, p['ln_w'], p['ln_b'])
    h = jnp.maximum(xn @ p['w1'] + p['b1'], 0.0)
    return h @ p['w2'] + p['b2'] + x


def reference_decoder_forward(params, src, tgt, memory_bank, *, heads, padding_idx=0):
    Lt, B = tgt.shape
    Ls = src.shape[0]
    D = params['embedding'].shape[1]
    emb = params['embedding'][tgt]
    emb = emb * math.sqrt(D) + params['pe'][:Lt][:, None, :]
    x = jnp.transpose(emb, (1, 0, 2))
    memory = jnp.transpose(memory_bank, (1, 0, 2))
    src_words = src.T
    tgt_words = tgt.T
    causal = jnp.triu(jnp.ones((Lt, Lt), jnp.float32), k=1)
    tgt_pad = (tgt_words == padding_idx).astype(jnp.float32)[:, None, :]
    dec_mask = ((tgt_pad + causal[None]) > 0).astype(jnp.float32)
    src_mask = jnp.broadcast_to(
        (src_words == padding_idx).astype(jnp.float32)[:, None, :], (B, Lt, Ls))
    attn = None
    for p in params['layers']:
        xn = _ref_ln(x, p['ln1_w'], p['ln1_b'])
        query, _ = _ref_mha(xn, xn, xn, dec_mask, p['self_attn'], heads)
        query = query + x
        qn = _ref_ln(query, p['ln2_w'], p['ln2_b'])
        mid, attn = _ref_mha(memory, memory, qn, src_mask, p['ctx_attn'], heads)
        x = _ref_ffn(mid + query, p['ffn'])
    x = _ref_ln(x, params['ln_w'], params['ln_b'])
    return jnp.transpose(x, (1, 0, 2)), jnp.transpose(attn, (1, 0, 2))


# ----------------------------------------------------------------------------
# Parameter init (keeps both separate and packed projection weights)
# ----------------------------------------------------------------------------
def init_decoder_params(key, *, vocab, d_model, d_ff, heads, num_layers, max_len,
                        padding_idx=0):
    k_emb, k_layers, k_ln = jax.random.split(key, 3)

    def dense(k, din, dout, scale=0.1):
        kw, kb = jax.random.split(k)
        return (scale * jax.random.normal(kw, (din, dout), jnp.float32),
                scale * jax.random.normal(kb, (dout,), jnp.float32))

    def ln_params(k, d):
        kw, kb = jax.random.split(k)
        return (1.0 + 0.1 * jax.random.normal(kw, (d,), jnp.float32),
                0.1 * jax.random.normal(kb, (d,), jnp.float32))

    def attn_params(k):
        ks = jax.random.split(k, 4)
        wq, bq = dense(ks[0], d_model, d_model)
        wk, bk = dense(ks[1], d_model, d_model)
        wv, bv = dense(ks[2], d_model, d_model)
        wo, bo = dense(ks[3], d_model, d_model)
        # TODO(synk): packed weights could be stored in bf16 to halve their HBM traffic.
        return dict(wq=wq, bq=bq, wk=wk, bk=bk, wv=wv, bv=bv, wo=wo, bo=bo,
                    w_qkv=jnp.concatenate([wq, wk, wv], axis=1),
                    b_qkv=jnp.concatenate([bq, bk, bv], axis=0),
                    w_kv=jnp.concatenate([wk, wv], axis=1),
                    b_kv=jnp.concatenate([bk, bv], axis=0))

    def layer_params(k):
        ks = jax.random.split(k, 7)
        ln1_w, ln1_b = ln_params(ks[0], d_model)
        ln2_w, ln2_b = ln_params(ks[1], d_model)
        ffn_ln_w, ffn_ln_b = ln_params(ks[2], d_model)
        w1, b1 = dense(ks[3], d_model, d_ff)
        w2, b2 = dense(ks[4], d_ff, d_model)
        return dict(ln1_w=ln1_w, ln1_b=ln1_b, ln2_w=ln2_w, ln2_b=ln2_b,
                    self_attn=attn_params(ks[5]), ctx_attn=attn_params(ks[6]),
                    ffn=dict(ln_w=ffn_ln_w, ln_b=ffn_ln_b, w1=w1, b1=b1, w2=w2, b2=b2))

    emb = 0.5 * jax.random.normal(k_emb, (vocab, d_model), jnp.float32)
    emb = emb.at[padding_idx].set(0.0)          # nn.Embedding padding_idx row is zero
    ln_w, ln_b = ln_params(k_ln, d_model)
    return dict(
        embedding=emb,
        pe=make_pe_table(max_len, d_model),
        layers=[layer_params(k) for k in jax.random.split(k_layers, num_layers)],
        ln_w=ln_w, ln_b=ln_b)


# ----------------------------------------------------------------------------
# demo / self-check
# ----------------------------------------------------------------------------
if __name__ == "__main__":
    B, Lt, Ls = 2, 8, 16
    D, D_FF, HEADS, LAYERS = 128, 256, 4, 2
    VOCAB, MAX_LEN, PAD = 50, 64, 0

    root = jax.random.PRNGKey(0)
    k_params, k_mem, k_src, k_tgt, k_emb_test = jax.random.split(root, 5)
    params = init_decoder_params(k_params, vocab=VOCAB, d_model=D, d_ff=D_FF,
                                 heads=HEADS, num_layers=LAYERS, max_len=MAX_LEN,
                                 padding_idx=PAD)

    # --- standalone PositionalEncoding checks (module-native (S, B, D) layout, eval mode) ---
    emb_test = jax.random.normal(k_emb_test, (Lt, B, D), jnp.float32)
    out_pe = jax.block_until_ready(positional_encoding(emb_test, params['pe'],
                                                       dropout_p=0.1, training=False))
    ref_pe = emb_test * math.sqrt(D) + params['pe'][:Lt][:, None, :]
    assert out_pe.shape == (Lt, B, D)
    assert jnp.allclose(out_pe, ref_pe, atol=1e-5, rtol=1e-5), "PE mismatch"

    out_step = jax.block_until_ready(positional_encoding(emb_test[:1], params['pe'], step=3))
    ref_step = emb_test[:1] * math.sqrt(D) + params['pe'][3][None, None, :]
    assert jnp.allclose(out_step, ref_step, atol=1e-5, rtol=1e-5), "PE step mismatch"

    # --- full TransformerDecoder forward (eval mode, step=None) ---
    src = jax.random.randint(k_src, (Ls, B), 1, VOCAB, dtype=jnp.int32)
    src = src.at[-2:, 0].set(PAD)        # padded source positions (exercise src_pad_mask)
    tgt = jax.random.randint(k_tgt, (Lt, B), 1, VOCAB, dtype=jnp.int32)
    tgt = tgt.at[-1, 1].set(PAD)         # padded target position (exercise tgt_pad_mask)
    memory_bank = jax.random.normal(k_mem, (Ls, B, D), jnp.float32)

    decoder_fn = jax.jit(functools.partial(transformer_decoder_forward,
                                           heads=HEADS, padding_idx=PAD))
    dec_outs, attn = decoder_fn(params, src, tgt, memory_bank)
    dec_outs = jax.block_until_ready(dec_outs)
    attn = jax.block_until_ready(attn)

    ref_outs, ref_attn = reference_decoder_forward(params, src, tgt, memory_bank,
                                                   heads=HEADS, padding_idx=PAD)
    assert dec_outs.shape == (Lt, B, D)
    assert attn.shape == (Lt, B, Ls)
    # Tolerances account for bf16 MXU operands + approx reciprocal vs the full-f32 reference.
    assert jnp.allclose(dec_outs, ref_outs, atol=5e-2, rtol=5e-2), "decoder output mismatch"
    assert jnp.allclose(attn, ref_attn, atol=5e-2, rtol=5e-2), "attention mismatch"

    print("KERNEL_OK")
</pallas_src>

<mosaic_0001>
module attributes {stable_mosaic.version = 11 : i64} {
  func.func @_pos_enc_kernel(%arg0: i32, %arg1: memref<1xi32, #tpu.memory_space<smem>>, %arg2: memref<2x8x128xf32, #tpu.memory_space<vmem>>, %arg3: memref<8x128xf32, #tpu.memory_space<vmem>>, %arg4: memref<2x8x128xf32, #tpu.memory_space<vmem>>) attributes {dimension_semantics = [#tpu.dimension_semantics<parallel>], iteration_bounds = array<i64: 1>, scalar_prefetch = 1 : i64, scratch_operands = 0 : i64, tpu.core_type = #tpu.core_type<tc>, window_params = [{transform_indices = @transform_0, window_bounds = array<i64: 2, 8, 128>}, {transform_indices = @transform_1, window_bounds = array<i64: 8, 128>}, {transform_indices = @transform_2, window_bounds = array<i64: 2, 8, 128>}]} {
    %c0 = arith.constant 0 : index
    %c0_0 = arith.constant 0 : index
    %c0_1 = arith.constant 0 : index
    %0 = vector.load %arg2[%c0, %c0_0, %c0_1] : memref<2x8x128xf32, #tpu.memory_space<vmem>>, vector<2x8x128xf32>
    %cst = arith.constant 11.3137083 : f32
    %1 = vector.broadcast %cst : f32 to vector<2x8x128xf32>
    %2 = arith.mulf %0, %1 : vector<2x8x128xf32>
    %c0_2 = arith.constant 0 : index
    %c0_3 = arith.constant 0 : index
    %3 = vector.load %arg3[%c0_2, %c0_3] : memref<8x128xf32, #tpu.memory_space<vmem>>, vector<8x128xf32>
    %4 = vector.shape_cast %3 : vector<8x128xf32> to vector<1x8x128xf32>
    %5 = vector.broadcast %4 : vector<1x8x128xf32> to vector<2x8x128xf32>
    %6 = arith.addf %2, %5 : vector<2x8x128xf32>
    %c0_4 = arith.constant 0 : index
    %c0_5 = arith.constant 0 : index
    %c0_6 = arith.constant 0 : index
    %7 = vector.load %arg4[%c0_4, %c0_5, %c0_6] : memref<2x8x128xf32, #tpu.memory_space<vmem>>, vector<2x8x128xf32>
    tpu.vector_store %arg4[%c0_4, %c0_5, %c0_6], %6 {strides = array<i32>} : memref<2x8x128xf32, #tpu.memory_space<vmem>>, vector<2x8x128xf32>,
    return
  }
  func.func @transform_0(%arg0: i32, %arg1: memref<1xi32, #tpu.memory_space<smem>>) -> (i32, i32, i32) {
    %c0_i32 = arith.constant 0 : i32
    %c0_i32_0 = arith.constant 0 : i32
    %c0_i32_1 = arith.constant 0 : i32
    return %c0_i32, %arg0, %c0_i32_0 : i32, i32, i32
  }
  func.func @transform_1(%arg0: i32, %arg1: memref<1xi32, #tpu.memory_space<smem>>) -> (i32, i32) {
    %c0_i32 = arith.constant 0 : i32
    %c0_i32_0 = arith.constant 0 : i32
    return %arg0, %c0_i32 : i32, i32
  }
  func.func @transform_2(%arg0: i32, %arg1: memref<1xi32, #tpu.memory_space<smem>>) -> (i32, i32, i32) {
    %c0_i32 = arith.constant 0 : i32
    %c0_i32_0 = arith.constant 0 : i32
    %c0_i32_1 = arith.constant 0 : i32
    return %c0_i32, %arg0, %c0_i32_0 : i32, i32, i32
  }
}

</mosaic_0001>

<llo_original>
// kernel: tpu_custom_call.1
$region0: #{tpu_custom_call.1}
  #allocation0 [shape = 'u32[]', space=smem, size = 0x4, offset = 0x4, fixed_abs, tag = 'smem constant byte address 0x4 - core index']
  #allocation1 [shape = 'u32[144,128]{1,0:T(1,128)}', space=vmem, size = 0x12000, scoped, tag = 'internal scratch']
  #allocation2 [shape = 's32[1]{0}', space=sflag, size = 0x4, scoped, tag = 'scoped memory for tpu_custom_call.1']
  #allocation3 [shape = 's32[1]{0:T(128)S(6)}', space=smem, size = 0x200, scoped, tag = 'prefetched SMEM operand 0']
  %s0 = inlined_call_operand.<no memory space> [shape: s32[1], index: 0, kind: input, shape index: {}]
  %s1 = inlined_call_operand.hbm [shape: f32[2,8,128], index: 1, kind: input, shape index: {}]
  %s2 = inlined_call_operand.hbm [shape: f32[8,128], index: 2, kind: input, shape index: {}]
  %s3 = inlined_call_operand.hbm [shape: f32[2,8,128], index: 3, kind: output, shape index: {}]
  %s4 = sld [smem:[#allocation0]]
  $region26: #{tpu_custom_call.1} parent=0
    _
  %s6 = ssub.s32 1, %s4
  %s7 = scalar_select 0, %s6, %s4
  %8 = sst [smem:[#allocation3]] %s0
  $region1: #{tpu_custom_call.1} parent=0
    #allocation4 [shape = 'u8[8192]{0}', space=vmem, size = 0x2000, scoped, tag = 'input window, operand 1, single buffered']
    #allocation5 [shape = 's32[1]{0}', space=sflag, size = 0x4, scoped, tag = 'scoped memory for tpu_custom_call.1']
    #allocation6 [shape = 's32[1]{0}', space=sflag, size = 0x4, scoped, tag = 'scoped memory for tpu_custom_call.1']
    #allocation7 [shape = 'u8[4096]{0}', space=vmem, size = 0x1000, scoped, tag = 'input window, operand 2, single buffered']
    #allocation8 [shape = 's32[1]{0}', space=sflag, size = 0x4, scoped, tag = 'scoped memory for tpu_custom_call.1']
    #allocation9 [shape = 'u8[8192]{0}', space=vmem, size = 0x2000, scoped, tag = 'output window, operand 0, single buffered']
    %9 = vsyncpa [#allocation5], 0
    %10 = vsyncpa [#allocation8], 0
    %11 = vsyncpa [#allocation6], 0
    // Predicated region
    $region2: #{tpu_custom_call.1} parent=1 // pred_check
      _
    $region3: #{tpu_custom_call.1} parent=1 // pred_check_branch
      %13 = sbr.rel (0) target = $region5
    $region4: #{tpu_custom_call.1} parent=1 // pred_region
      %s15 = ssub.s32 256, 256
      %16 = vsyncadd [#allocation5], %s15
      %s17 = sshll.u32 [#allocation4], 4
      %s18 = int_to_ptr.vmem [resolvable:$true] %s17
      %23 = dma.hbm_to_vmem [thread:$0]  %s1, 256, %s18, [#allocation5], 128, 128, 8
    $region5: #{tpu_custom_call.1} parent=1 // pred_fallthru
      _
    // Predicated region
    $region6: #{tpu_custom_call.1} parent=1 // pred_check
      _
    $region7: #{tpu_custom_call.1} parent=1 // pred_check_branch
      %25 = sbr.rel (0) target = $region9
    $region8: #{tpu_custom_call.1} parent=1 // pred_region
      %s27 = ssub.s32 128, 128
      %28 = vsyncadd [#allocation8], %s27
      %s30 = sshll.u32 [#allocation7], 4
      %s31 = int_to_ptr.vmem [resolvable:$true] %s30
      %33 = dma.hbm_to_vmem [thread:$0]  %s2, 128, %s31, [#allocation8]
    $region9: #{tpu_custom_call.1} parent=1 // pred_fallthru
      _
    // Predicated region
    $region10: #{tpu_custom_call.1} parent=1 // pred_check
      _
    $region11: #{tpu_custom_call.1} parent=1 // pred_check_branch
      %35 = sbr.rel (0) target = $region13
    $region12: #{tpu_custom_call.1} parent=1 // pred_region
      %36 = dma.done [#allocation5], 256
    $region13: #{tpu_custom_call.1} parent=1 // pred_fallthru
      _
    // Predicated region
    $region14: #{tpu_custom_call.1} parent=1 // pred_check
      _
    $region15: #{tpu_custom_call.1} parent=1 // pred_check_branch
      %38 = sbr.rel (0) target = $region17
    $region16: #{tpu_custom_call.1} parent=1 // pred_region
      %39 = dma.done [#allocation8], 128
    $region17: #{tpu_custom_call.1} parent=1 // pred_fallthru
      _
    %v40 = vld [vmem:[#allocation4] sm:$0xff]
    %v41 = vld [vmem:[#allocation4 + $0x8] sm:$0xff]
    %v42 = vmul.f32 %v40, 11.313708
    %v43 = vmul.f32 %v41, 11.313708
    %v44 = vld [vmem:[#allocation7] sm:$0xff]
    %v45 = vadd.f32 %v42, %v44
    %v46 = vadd.f32 %v43, %v44
    %47 = vst [vmem:[#allocation9] sm:$0xff] %v45
    %48 = vst [vmem:[#allocation9 + $0x8] sm:$0xff] %v46
    // Predicated region
    $region18: #{tpu_custom_call.1} parent=1 // pred_check
      _
    $region19: #{tpu_custom_call.1} parent=1 // pred_check_branch
      %50 = sbr.rel (0) target = $region21
    $region20: #{tpu_custom_call.1} parent=1 // pred_region
      %s52 = ssub.s32 256, 256
      %53 = vsyncadd [#allocation6], %s52
      %s54 = sshll.u32 [#allocation9], 4
      %s55 = int_to_ptr.vmem [resolvable:$true] %s54
      %60 = dma.vmem_to_hbm [thread:$0]  %s55, 256, %s3, [#allocation6], 128, 128, 8
    $region21: #{tpu_custom_call.1} parent=1 // pred_fallthru
      _
    // Predicated region
    $region22: #{tpu_custom_call.1} parent=1 // pred_check
      _
    $region23: #{tpu_custom_call.1} parent=1 // pred_check_branch
      %62 = sbr.rel (0) target = $region25
    $region24: #{tpu_custom_call.1} parent=1 // pred_region
      %63 = dma.done [#allocation6], 256
    $region25: #{tpu_custom_call.1} parent=1 // pred_fallthru
      _
    %64 = vsyncpa [#allocation5], 1
    %65 = vsyncpa [#allocation8], 1
    %66 = vsyncpa [#allocation6], 1

</llo_original>
